<compile_context>
chip_gen: v7x
topology: tpu7x:2x2x1
jax: 0.10.0
libtpu: 0.0.40
codegen_flags: <defaults>
</compile_context>

<pallas_src>
import functools
import math

import jax
import jax.numpy as jnp
from jax.experimental import pallas as pl
from jax.experimental.pallas import tpu as pltpu


# ---------------------------------------------------------------------------
# Kernel
# ---------------------------------------------------------------------------
def _crosstalk_kernel(strength, n, x_ref, o_ref):
    # Block shape: (n, s_blk, lane). Batch is the leading, untiled dim, so the
    # batch roll is expressed as two direct stores (static slices on the
    # leading axis) -- no block-sized concatenate temporary, no cross-lane or
    # cross-sublane data movement.
    t = x_ref[...]
    s = jnp.asarray(strength, dtype=t.dtype)
    if n == 1:
        o_ref[...] = t + t * s
    else:
        o_ref[0:1] = t[0:1] + t[n - 1:n] * s
        o_ref[1:n] = t[1:n] + t[0:n - 1] * s


# ---------------------------------------------------------------------------
# Tiling / VMEM planning
# ---------------------------------------------------------------------------
def _sublane_multiple(dtype):
    size = jnp.dtype(dtype).itemsize
    if size >= 4:
        return 8
    if size == 2:
        return 16
    return 32  # int8 / fp8


def _vmem_plan():
    """Generation-aware scoped-VMEM limit and per-block byte budget."""
    vmem_cap = 64 << 20  # conservative default == v7x per-TC VMEM
    try:
        vmem_cap = int(pltpu.get_tpu_info().vmem_capacity_bytes)
    except Exception:  # noqa: BLE001 - best-effort hardware query
        pass
    # Leave headroom below physical capacity; 48 MiB is safe on v7x (64 MiB)
    # and plenty on v5e/v6e (128 MiB).  Total residency ~= 4x block
    # (input + output, each double-buffered), so budget blocks at limit/4,
    # capped at 8 MiB (diminishing returns beyond that for an HBM stream).
    vmem_limit = min(vmem_cap * 3 // 4, 48 << 20)
    block_budget = min(vmem_limit // 4, 8 << 20)
    return vmem_limit, block_budget


def _pick_tiling(n, f_pad, itemsize, sub, block_budget):
    """Factor the (padded) feature dim into (S, LANE) and pick S_BLK.

    Returns (lane, s, s_blk) or None if the untiled batch axis makes even a
    minimal block exceed the budget (caller falls back to pure JAX).
    """
    lane = None
    # Prefer a lane width that leaves S a multiple of the sublane granularity.
    for cand in (1024, 512, 256, 128):
        if f_pad % cand == 0 and (f_pad // cand) % sub == 0:
            lane = cand
            break
    if lane is None:
        for cand in (1024, 512, 256, 128):
            if f_pad % cand == 0:
                lane = cand
                break
    if lane is None:
        # Should not happen after padding, but full-dim blocks are always legal.
        lane = f_pad
    s = f_pad // lane

    row_bytes = n * lane * itemsize
    if row_bytes * min(sub, s) > block_budget:
        return None  # untiled batch too large for this plan -> fallback

    s_blk = s  # full extent is always a legal block
    if s % sub == 0:
        max_rows = max(sub, (block_budget // row_bytes) // sub * sub)
        # Force >= 2 grid steps when possible so v7x can shard the feature
        # axis across both TensorCores (single-step grids stream on one TC).
        if s >= 2 * sub:
            half = max(sub, (s // 2) // sub * sub)
            max_rows = min(max_rows, half)
        d = min(s, max_rows) // sub * sub
        while d >= sub:
            if s % d == 0:
                s_blk = d
                break
            d -= sub
    return lane, s, s_blk


# ---------------------------------------------------------------------------
# Wrapper
# ---------------------------------------------------------------------------
_FAST_PATH_BYTES = 1 << 20  # below ~1 MiB, XLA's fused elementwise op wins


def _jax_fallback(x, strength):
    rolled = jnp.concatenate([x[-1:], x[:-1]], axis=0)
    return x + rolled * jnp.asarray(strength, dtype=x.dtype)


def cross_talk(x, strength=0.2, training=True, force_pallas=False):
    """Pallas implementation of CrossTalk.forward. x: [N, C, H, W]."""
    if not training:
        return x
    strength = float(strength)  # static hyperparameter
    if strength == 0.0:
        return x

    n = x.shape[0]
    f = math.prod(x.shape[1:])
    itemsize = jnp.dtype(x.dtype).itemsize
    total_bytes = n * f * itemsize

    if n == 0 or f == 0:
        return x
    if total_bytes < _FAST_PATH_BYTES and not force_pallas:
        return _jax_fallback(x, strength)

    sub = _sublane_multiple(x.dtype)
    vmem_limit, block_budget = _vmem_plan()

    # Pad the flattened feature axis to a multiple of 128 so the lane axis is
    # dense (unmasked stores, well-shaped DMAs).  Padding costs < 1/128 bytes.
    f_pad = (f + 127) // 128 * 128

    plan = _pick_tiling(n, f_pad, itemsize, sub, block_budget)
    if plan is None:
        # Untiled batch axis would blow the per-block budget -> pure JAX.
        return _jax_fallback(x, strength)
    lane, s, s_blk = plan

    x2 = x.reshape(n, f)
    if f_pad != f:
        x2 = jnp.pad(x2, ((0, 0), (0, f_pad - f)))
    x3 = x2.reshape(n, s, lane)

    block = (n, s_blk, lane)
    spec = pl.BlockSpec(block, lambda i: (0, i, 0))

    out3 = pl.pallas_call(
        functools.partial(_crosstalk_kernel, strength, n),
        out_shape=jax.ShapeDtypeStruct((n, s, lane), x.dtype),
        grid_spec=pltpu.PrefetchScalarGridSpec(
            num_scalar_prefetch=0,
            grid=(s // s_blk,),
            in_specs=[spec],
            out_specs=spec,
        ),
        compiler_params=pltpu.CompilerParams(
            # Feature tiles are independent -> shard across both v7x TCs.
            dimension_semantics=("parallel",),
            vmem_limit_bytes=vmem_limit,
        ),
        cost_estimate=pl.CostEstimate(
            flops=2 * n * f_pad,
            transcendentals=0,
            bytes_accessed=2 * n * f_pad * itemsize,  # 1 read + 1 write pass
        ),
    )(x3)

    out = out3.reshape(n, f_pad)
    if f_pad != f:
        out = out[:, :f]
    return out.reshape(x.shape)


def _reference(x, strength=0.2):
    rolled = jnp.concatenate([x[-1:], x[:-1]], axis=0)
    return x + rolled * strength


if __name__ == "__main__":
    key = jax.random.PRNGKey(0)

    # Small shape consistent with the module (NCHW image batch); force the
    # Pallas path so the kernel itself is exercised.
    x = jax.random.normal(key, (2, 4, 16, 16), dtype=jnp.float32)
    out = jax.block_until_ready(
        cross_talk(x, strength=0.2, training=True, force_pallas=True))
    ref = _reference(x, strength=0.2)
    assert out.shape == x.shape and out.dtype == x.dtype
    assert jnp.allclose(out, ref, atol=1e-6, rtol=1e-6)

    # Eval mode is identity.
    out_eval = cross_talk(x, strength=0.2, training=False)
    assert jnp.array_equal(out_eval, x)

    # Larger shape: exercises the multi-step feature grid (>=2 grid steps).
    x2 = jax.random.normal(jax.random.PRNGKey(0), (2, 64, 64, 64), dtype=jnp.float32)
    out2 = jax.block_until_ready(cross_talk(x2, strength=0.3, training=True))
    ref2 = _reference(x2, strength=0.3)
    assert jnp.allclose(out2, ref2, atol=1e-6, rtol=1e-6)

    # Feature size not a multiple of 128: exercises the pad/slice path.
    x3 = jax.random.normal(jax.random.PRNGKey(0), (3, 3, 17, 19), dtype=jnp.float32)
    out3 = jax.block_until_ready(
        cross_talk(x3, strength=0.25, training=True, force_pallas=True))
    ref3 = _reference(x3, strength=0.25)
    assert jnp.allclose(out3, ref3, atol=1e-6, rtol=1e-6)

    print("KERNEL_OK")
</pallas_src>

<mosaic_0001>
module attributes {stable_mosaic.version = 11 : i64} {
  func.func @_crosstalk_kernel(%arg0: i32, %arg1: memref<2x8x128xf32, #tpu.memory_space<vmem>>, %arg2: memref<2x8x128xf32, #tpu.memory_space<vmem>>) attributes {dimension_semantics = [#tpu.dimension_semantics<parallel>], iteration_bounds = array<i64: 1>, scalar_prefetch = 0 : i64, scratch_operands = 0 : i64, tpu.core_type = #tpu.core_type<tc>, window_params = [{transform_indices = @transform_0, window_bounds = array<i64: 2, 8, 128>}, {transform_indices = @transform_1, window_bounds = array<i64: 2, 8, 128>}]} {
    %c0 = arith.constant 0 : index
    %c0_0 = arith.constant 0 : index
    %c0_1 = arith.constant 0 : index
    %0 = vector.load %arg1[%c0, %c0_0, %c0_1] : memref<2x8x128xf32, #tpu.memory_space<vmem>>, vector<2x8x128xf32>
    %1 = vector.extract_strided_slice %0 {offsets = [0, 0, 0], sizes = [1, 8, 128], strides = [1, 1, 1]} : vector<2x8x128xf32> to vector<1x8x128xf32>
    %2 = vector.extract_strided_slice %0 {offsets = [1, 0, 0], sizes = [1, 8, 128], strides = [1, 1, 1]} : vector<2x8x128xf32> to vector<1x8x128xf32>
    %cst = arith.constant 2.000000e-01 : f32
    %3 = vector.broadcast %cst : f32 to vector<1x8x128xf32>
    %4 = arith.mulf %2, %3 : vector<1x8x128xf32>
    %5 = arith.addf %1, %4 : vector<1x8x128xf32>
    %c0_2 = arith.constant 0 : index
    %c0_3 = arith.constant 0 : index
    %c0_4 = arith.constant 0 : index
    %6 = vector.load %arg2[%c0_2, %c0_3, %c0_4] : memref<2x8x128xf32, #tpu.memory_space<vmem>>, vector<1x8x128xf32>
    tpu.vector_store %arg2[%c0_2, %c0_3, %c0_4], %5 {strides = array<i32>} : memref<2x8x128xf32, #tpu.memory_space<vmem>>, vector<1x8x128xf32>,
    %7 = vector.extract_strided_slice %0 {offsets = [1, 0, 0], sizes = [1, 8, 128], strides = [1, 1, 1]} : vector<2x8x128xf32> to vector<1x8x128xf32>
    %8 = vector.extract_strided_slice %0 {offsets = [0, 0, 0], sizes = [1, 8, 128], strides = [1, 1, 1]} : vector<2x8x128xf32> to vector<1x8x128xf32>
    %cst_5 = arith.constant 2.000000e-01 : f32
    %9 = vector.broadcast %cst_5 : f32 to vector<1x8x128xf32>
    %10 = arith.mulf %8, %9 : vector<1x8x128xf32>
    %11 = arith.addf %7, %10 : vector<1x8x128xf32>
    %c1 = arith.constant 1 : index
    %c0_6 = arith.constant 0 : index
    %c0_7 = arith.constant 0 : index
    %12 = vector.load %arg2[%c1, %c0_6, %c0_7] : memref<2x8x128xf32, #tpu.memory_space<vmem>>, vector<1x8x128xf32>
    tpu.vector_store %arg2[%c1, %c0_6, %c0_7], %11 {strides = array<i32>} : memref<2x8x128xf32, #tpu.memory_space<vmem>>, vector<1x8x128xf32>,
    return
  }
  func.func @transform_0(%arg0: i32) -> (i32, i32, i32) {
    %c0_i32 = arith.constant 0 : i32
    %c0_i32_0 = arith.constant 0 : i32
    %c0_i32_1 = arith.constant 0 : i32
    return %c0_i32, %arg0, %c0_i32_0 : i32, i32, i32
  }
  func.func @transform_1(%arg0: i32) -> (i32, i32, i32) {
    %c0_i32 = arith.constant 0 : i32
    %c0_i32_0 = arith.constant 0 : i32
    %c0_i32_1 = arith.constant 0 : i32
    return %c0_i32, %arg0, %c0_i32_0 : i32, i32, i32
  }
}

</mosaic_0001>

<llo_original>
// kernel: tpu_custom_call.1
$region0: #{tpu_custom_call.1}
  #allocation0 [shape = 'u32[]', space=smem, size = 0x4, offset = 0x4, fixed_abs, tag = 'smem constant byte address 0x4 - core index']
  #allocation1 [shape = 'u32[144,128]{1,0:T(1,128)}', space=vmem, size = 0x12000, scoped, tag = 'internal scratch']
  %s0 = inlined_call_operand.hbm [shape: f32[2,8,128], index: 0, kind: input, shape index: {}]
  %s1 = inlined_call_operand.hbm [shape: f32[2,8,128], index: 1, kind: output, shape index: {}]
  %s2 = sld [smem:[#allocation0]]
  $region18: #{tpu_custom_call.1} parent=0
    _
  %s4 = ssub.s32 1, %s2
  %s5 = scalar_select 0, %s4, %s2
  $region1: #{tpu_custom_call.1} parent=0
    #allocation2 [shape = 'u8[8192]{0}', space=vmem, size = 0x2000, scoped, tag = 'input window, operand 0, single buffered']
    #allocation3 [shape = 's32[1]{0}', space=sflag, size = 0x4, scoped, tag = 'scoped memory for tpu_custom_call.1']
    #allocation4 [shape = 's32[1]{0}', space=sflag, size = 0x4, scoped, tag = 'scoped memory for tpu_custom_call.1']
    #allocation5 [shape = 'u8[8192]{0}', space=vmem, size = 0x2000, scoped, tag = 'output window, operand 0, single buffered']
    %6 = vsyncpa [#allocation3], 0
    %7 = vsyncpa [#allocation4], 0
    // Predicated region
    $region2: #{tpu_custom_call.1} parent=1 // pred_check
      _
    $region3: #{tpu_custom_call.1} parent=1 // pred_check_branch
      %9 = sbr.rel (0) target = $region5
    $region4: #{tpu_custom_call.1} parent=1 // pred_region
      %s11 = ssub.s32 256, 256
      %12 = vsyncadd [#allocation3], %s11
      %s13 = sshll.u32 [#allocation2], 4
      %s14 = int_to_ptr.vmem [resolvable:$true] %s13
      %19 = dma.hbm_to_vmem [thread:$0]  %s0, 256, %s14, [#allocation3], 128, 128, 8
    $region5: #{tpu_custom_call.1} parent=1 // pred_fallthru
      _
    // Predicated region
    $region6: #{tpu_custom_call.1} parent=1 // pred_check
      _
    $region7: #{tpu_custom_call.1} parent=1 // pred_check_branch
      %21 = sbr.rel (0) target = $region9
    $region8: #{tpu_custom_call.1} parent=1 // pred_region
      %22 = dma.done [#allocation3], 256
    $region9: #{tpu_custom_call.1} parent=1 // pred_fallthru
      _
    %v23 = vld [vmem:[#allocation2] sm:$0xff]
    %v24 = vld [vmem:[#allocation2 + $0x8] sm:$0xff]
    %v25 = vmul.f32 %v24, 0.2
    %v26 = vadd.f32 %v23, %v25
    %27 = vst [vmem:[#allocation5] sm:$0xff] %v26
    %v28 = vmul.f32 %v23, 0.2
    %v29 = vadd.f32 %v24, %v28
    %s30 = scalar_lea.vmem [#allocation5], 8
    %31 = vst [vmem:[%s30] sm:$0xff] %v29
    // Predicated region
    $region10: #{tpu_custom_call.1} parent=1 // pred_check
      _
    $region11: #{tpu_custom_call.1} parent=1 // pred_check_branch
      %33 = sbr.rel (0) target = $region13
    $region12: #{tpu_custom_call.1} parent=1 // pred_region
      %s35 = ssub.s32 256, 256
      %36 = vsyncadd [#allocation4], %s35
      %s37 = sshll.u32 [#allocation5], 4
      %s38 = int_to_ptr.vmem [resolvable:$true] %s37
      %43 = dma.vmem_to_hbm [thread:$0]  %s38, 256, %s1, [#allocation4], 128, 128, 8
    $region13: #{tpu_custom_call.1} parent=1 // pred_fallthru
      _
    // Predicated region
    $region14: #{tpu_custom_call.1} parent=1 // pred_check
      _
    $region15: #{tpu_custom_call.1} parent=1 // pred_check_branch
      %45 = sbr.rel (0) target = $region17
    $region16: #{tpu_custom_call.1} parent=1 // pred_region
      %46 = dma.done [#allocation4], 256
    $region17: #{tpu_custom_call.1} parent=1 // pred_fallthru
      _
    %47 = vsyncpa [#allocation3], 1
    %48 = vsyncpa [#allocation4], 1

</llo_original>
